<compile_context>
chip_gen: v5e
topology: v5e:2x2
jax: 0.10.0
libtpu: 0.0.40
codegen_flags: <defaults>
</compile_context>

<pallas_src>
import jax
import jax.numpy as jnp
from jax.experimental import pallas as pl
from jax.experimental.pallas import tpu as pltpu


def _round_up(x, m):
    return (x + m - 1) // m * m


def edge_expansion_kernel(x_ref, w_ref, o_ref):
    """x_ref: (TM, D) edge vectors; w_ref: (D, L) interleaved weight rows
    (w_ref[d, c*D + d] = W[c], 0 elsewhere); o_ref: (TM, L) with lane c*D+d."""
    x = x_ref[...]                                    # (TM, D) f32
    D = x.shape[-1]
    cols = [x[:, d:d + 1] for d in range(D)]          # D x (TM, 1)

    # Sum of squares as explicit per-column FMAs (D is tiny & static).
    sumsq = cols[0] * cols[0]
    for d in range(1, D):
        sumsq = sumsq + cols[d] * cols[d]

    # 1 / (||x|| + 1e-7) on the EUP instead of a VALU divide.
    inv = pl.reciprocal(jnp.sqrt(sumsq) + 1e-7, approx=False)   # (TM, 1)

    # out[n, c*D + d] = v[n, d] * W[c]   via   sum_d  (v[:, d] ⊗ w_row_d)
    acc = (cols[0] * inv) * w_ref[0:1, :]
    for d in range(1, D):
        acc = acc + (cols[d] * inv) * w_ref[d:d + 1, :]

    o_ref[...] = acc.astype(o_ref.dtype)


def edge_expansion(edge_vector, weight, *, tile_n=2048, out_dtype=None,
                   use_pallas=None):
    """EdgeExpansion.forward.

    edge_vector: (N, D); weight: (C, 1) = nn.Linear(1, C, bias=False).weight.
    Returns (N, C, D).
    """
    N, D = edge_vector.shape
    C = weight.shape[0]
    CD = C * D
    out_dtype = edge_vector.dtype if out_dtype is None else out_dtype

    # Small-problem gate: below ~2 MB of output, a fused XLA expression beats
    # kernel launch + grid-step overhead.
    if use_pallas is None:
        use_pallas = N * CD * jnp.dtype(out_dtype).itemsize >= (2 << 20)
    if not use_pallas:
        xf = edge_vector.astype(jnp.float32)
        norm = jnp.sqrt(jnp.sum(xf * xf, axis=1, keepdims=True))
        v = xf / (norm + 1e-7)
        wf = weight.reshape(C).astype(jnp.float32)
        return jnp.einsum('nd,c->ncd', v, wf).astype(out_dtype)

    # Lane layout: lane index = c*D + d.  Full-lane stores when CD % 128 == 0;
    # otherwise pad the lane axis to 128 and slice once afterwards.
    if CD % 128 == 0:
        L, need_lane_slice = CD, False
    else:
        L, need_lane_slice = _round_up(CD, 128), True

    # ---- Tile sizing (v5e / v6e / v7x aware) ----------------------------
    # * tile_n forced to a multiple of 8 (lowering requirement).
    # * double-buffered output block <= ~24 MiB (12 MiB per block) so it fits
    #   v7x's 32 MiB default scoped VMEM (and the explicit 32 MiB limit below
    #   is safe on v5e/v6e too).
    # * keep >= 2 grid steps when N allows so the "parallel" batch axis can
    #   shard across v7x's two TensorCores (no-op on single-TC v5e/v6e).
    block_budget_bytes = 12 * 1024 * 1024
    cap = max(8, (block_budget_bytes // (L * 4)) // 8 * 8)
    tile = min(int(tile_n), cap)
    tile = min(tile, _round_up(N, 8))
    if N > 16 and tile >= N:
        tile = (N + 1) // 2
    tile = max(8, _round_up(tile, 8))

    grid = pl.cdiv(N, tile)
    n_pad = grid * tile

    x = edge_vector.astype(jnp.float32)
    if n_pad != N:
        # Zero rows -> zero outputs; they land in the out-of-bounds part of the
        # last output block, which Pallas drops on writeback.
        x = jnp.pad(x, ((0, n_pad - N), (0, 0)))

    # Interleaved weight rows: w_rows[d, c*D + dd] = W[c, 0] * (d == dd).
    w_flat = weight.reshape(C).astype(jnp.float32)
    w_rows = (w_flat[None, :, None] *
              jnp.eye(D, dtype=jnp.float32)[:, None, :]).reshape(D, CD)
    if L != CD:
        w_rows = jnp.pad(w_rows, ((0, 0), (0, L - CD)))

    out = pl.pallas_call(
        edge_expansion_kernel,
        out_shape=jax.ShapeDtypeStruct((N, L), out_dtype),
        grid_spec=pltpu.PrefetchScalarGridSpec(
            num_scalar_prefetch=0,
            grid=(grid,),
            in_specs=[
                pl.BlockSpec((tile, D), lambda i: (i, 0)),   # edge-vector rows
                pl.BlockSpec((D, L), lambda i: (0, 0)),      # weight rows (grid-invariant)
            ],
            out_specs=pl.BlockSpec((tile, L), lambda i: (i, 0)),
        ),
        compiler_params=pltpu.CompilerParams(
            dimension_semantics=("parallel",),
            vmem_limit_bytes=32 * 1024 * 1024,
        ),
    )(x, w_rows)

    if need_lane_slice:
        out = out[:, :CD]
    # Free row-major view: lane c*D + d  ->  (N, C, D).  No transpose pass.
    return out.reshape(N, C, D)


if __name__ == "__main__":
    # EdgeExpansion(edge_channels=128) applied to 100 edge vectors in 3-D space
    # (C*D = 384 is a multiple of 128 -> fully lane-dense, transpose-free path).
    N, D, C = 100, 3, 128

    key = jax.random.PRNGKey(0)
    kx, kw = jax.random.split(key)
    edge_vector = jax.random.normal(kx, (N, D), jnp.float32)
    # nn.Linear(1, C) default init: U(-1/sqrt(fan_in), 1/sqrt(fan_in)), fan_in=1.
    weight = jax.random.uniform(kw, (C, 1), jnp.float32, -1.0, 1.0)

    # Force the Pallas path (the size heuristic would pick plain XLA here).
    out = edge_expansion(edge_vector, weight, use_pallas=True)
    jax.block_until_ready(out)

    # Pure-JAX reference (mirrors the PyTorch forward).
    norm = jnp.linalg.norm(edge_vector, axis=1, keepdims=True)
    v = edge_vector / (norm + 1e-7)
    ref = jnp.einsum('nd,c->ncd', v, weight.reshape(-1))

    assert out.shape == (N, C, D), out.shape
    assert jnp.allclose(out, ref, atol=1e-5, rtol=1e-5), "mismatch vs reference"
    print("KERNEL_OK")
</pallas_src>

<mosaic_0001>
module attributes {stable_mosaic.version = 11 : i64} {
  func.func @edge_expansion_kernel(%arg0: i32, %arg1: memref<56x3xf32, #tpu.memory_space<vmem>>, %arg2: memref<3x384xf32, #tpu.memory_space<vmem>>, %arg3: memref<56x384xf32, #tpu.memory_space<vmem>>) attributes {dimension_semantics = [#tpu.dimension_semantics<parallel>], iteration_bounds = array<i64: 2>, scalar_prefetch = 0 : i64, scratch_operands = 0 : i64, tpu.core_type = #tpu.core_type<tc>, window_params = [{transform_indices = @transform_0, window_bounds = array<i64: 56, 3>}, {pipeline_mode = #tpu.pipeline_mode<synchronous>, transform_indices = @transform_1, window_bounds = array<i64: 3, 384>}, {transform_indices = @transform_2, window_bounds = array<i64: 56, 384>}]} {
    %c0 = arith.constant 0 : index
    %c0_0 = arith.constant 0 : index
    %0 = vector.load %arg1[%c0, %c0_0] : memref<56x3xf32, #tpu.memory_space<vmem>>, vector<56x3xf32>
    %1 = vector.extract_strided_slice %0 {offsets = [0, 0], sizes = [56, 1], strides = [1, 1]} : vector<56x3xf32> to vector<56x1xf32>
    %2 = vector.extract_strided_slice %0 {offsets = [0, 1], sizes = [56, 1], strides = [1, 1]} : vector<56x3xf32> to vector<56x1xf32>
    %3 = vector.extract_strided_slice %0 {offsets = [0, 2], sizes = [56, 1], strides = [1, 1]} : vector<56x3xf32> to vector<56x1xf32>
    %4 = arith.mulf %1, %1 : vector<56x1xf32>
    %5 = arith.mulf %2, %2 : vector<56x1xf32>
    %6 = arith.addf %4, %5 : vector<56x1xf32>
    %7 = arith.mulf %3, %3 : vector<56x1xf32>
    %8 = arith.addf %6, %7 : vector<56x1xf32>
    %9 = math.sqrt %8 : vector<56x1xf32>
    %cst = arith.constant 1.000000e-07 : f32
    %10 = vector.broadcast %cst : f32 to vector<56x1xf32>
    %11 = arith.addf %9, %10 : vector<56x1xf32>
    %12 = tpu.reciprocal %11 : vector<56x1xf32> -> vector<56x1xf32>
    %13 = arith.mulf %1, %12 : vector<56x1xf32>
    %c0_1 = arith.constant 0 : index
    %c0_2 = arith.constant 0 : index
    %14 = vector.load %arg2[%c0_1, %c0_2] : memref<3x384xf32, #tpu.memory_space<vmem>>, vector<1x384xf32>
    %15 = vector.broadcast %13 : vector<56x1xf32> to vector<56x384xf32>
    %16 = vector.broadcast %14 : vector<1x384xf32> to vector<56x384xf32>
    %17 = arith.mulf %15, %16 : vector<56x384xf32>
    %18 = arith.mulf %2, %12 : vector<56x1xf32>
    %c1 = arith.constant 1 : index
    %c0_3 = arith.constant 0 : index
    %19 = vector.load %arg2[%c1, %c0_3] : memref<3x384xf32, #tpu.memory_space<vmem>>, vector<1x384xf32>
    %20 = vector.broadcast %18 : vector<56x1xf32> to vector<56x384xf32>
    %21 = vector.broadcast %19 : vector<1x384xf32> to vector<56x384xf32>
    %22 = arith.mulf %20, %21 : vector<56x384xf32>
    %23 = arith.addf %17, %22 : vector<56x384xf32>
    %24 = arith.mulf %3, %12 : vector<56x1xf32>
    %c2 = arith.constant 2 : index
    %c0_4 = arith.constant 0 : index
    %25 = vector.load %arg2[%c2, %c0_4] : memref<3x384xf32, #tpu.memory_space<vmem>>, vector<1x384xf32>
    %26 = vector.broadcast %24 : vector<56x1xf32> to vector<56x384xf32>
    %27 = vector.broadcast %25 : vector<1x384xf32> to vector<56x384xf32>
    %28 = arith.mulf %26, %27 : vector<56x384xf32>
    %29 = arith.addf %23, %28 : vector<56x384xf32>
    %c0_5 = arith.constant 0 : index
    %c0_6 = arith.constant 0 : index
    %30 = vector.load %arg3[%c0_5, %c0_6] : memref<56x384xf32, #tpu.memory_space<vmem>>, vector<56x384xf32>
    tpu.vector_store %arg3[%c0_5, %c0_6], %29 {strides = array<i32>} : memref<56x384xf32, #tpu.memory_space<vmem>>, vector<56x384xf32>,
    return
  }
  func.func @transform_0(%arg0: i32) -> (i32, i32) {
    %c0_i32 = arith.constant 0 : i32
    %c0_i32_0 = arith.constant 0 : i32
    return %arg0, %c0_i32 : i32, i32
  }
  func.func @transform_1(%arg0: i32) -> (i32, i32) {
    %c0_i32 = arith.constant 0 : i32
    %c0_i32_0 = arith.constant 0 : i32
    %c0_i32_1 = arith.constant 0 : i32
    return %c0_i32, %c0_i32_0 : i32, i32
  }
  func.func @transform_2(%arg0: i32) -> (i32, i32) {
    %c0_i32 = arith.constant 0 : i32
    %c0_i32_0 = arith.constant 0 : i32
    return %arg0, %c0_i32 : i32, i32
  }
}

</mosaic_0001>

<llo_original>
// kernel: tpu_custom_call.1
$region0: #{tpu_custom_call.1}
  #allocation0 [shape = 'u32[]', space=smem, size = 0x4, offset = 0x4, fixed_abs, tag = 'smem constant byte address 0x4 - core index']
  #allocation1 [shape = 'u32[72,128]{1,0:T(1,128)}', space=vmem, size = 0x9000, scoped, tag = 'internal scratch']
  %s0 = inlined_call_operand.vmem [shape: f32[112,3], index: 0, kind: input, shape index: {}]
  %s1 = inlined_call_operand.vmem [shape: f32[3,384], index: 1, kind: input, shape index: {}]
  %s2 = inlined_call_operand.hbm [shape: f32[100,384], index: 2, kind: output, shape index: {}]
  %s3 = sld [smem:[#allocation0]]
  $region41: #{tpu_custom_call.1} parent=0
    _
  %s5 = ssub.s32 1, %s3
  %s6 = scalar_select 0, %s5, %s3
  $region1: #{tpu_custom_call.1} parent=0
    #allocation2 [shape = 'u8[172032]{0}', space=vmem, size = 0x2a000, scoped, tag = 'output window, operand 0']
    #allocation3 [shape = 's32[2]{0}', space=sflag, size = 0x8, scoped, tag = 'scoped memory for tpu_custom_call.1']
    %7 = vsyncpa [#allocation3], 0
    %s8 = scalar_lea.sflag [#allocation3], 1
    %9 = vsyncpa %s8, 0
    loop: start=0, step=1, limit=4
    $region2: #{tpu_custom_call.1} parent=1 // loop_pre_header
      _
    $region3: #{tpu_custom_call.1} parent=1 // loop_header
      %s11 = sphi 0, %s15
      %p12 = scmp.ge.s32.totalorder %s11, 4
      %s21 = sphi 0, %s23
      %s24 = sphi 0, %s21
      %s25 = sphi 0, %s24
      %s41 = sphi 0, %s25
      %s45 = sphi 0, %s45
      %s47 = sphi 0, %s45
      %s48 = sphi 0, %s47
      %s62 = sphi 0, %s48
      %s68 = sphi 0, %s70
      %s71 = sphi 0, %s68
      %s72 = sphi 0, %s71
      %s88 = sphi 0, %s72
    $region4: #{tpu_custom_call.1} parent=1 // loop_header_branch
      %14 = sbr.rel (%p12) target = $region8
    $region5: #{tpu_custom_call.1} parent=1 // loop_body
      %s16 = ssub.s32 %s11, 1
      %s17 = ssub.s32 %s11, 2
      %s18 = sadd.s32 %s11, 1
      %s19 = ssub.s32 %s11, %s18
      %p20 = scmp.eq.s32.totalorder %s19, 0
      %s22 = sadd.s32 %s21, 1
      %s23 = scalar_select %p20, %s21, %s22
      %p26 = pneg %p20
      %p27 = scmp.eq.s32.totalorder %s11, 1
      %p28 = por %p26, %p27
      %p29 = scmp.ne.s32.totalorder %s21, %s24
      %p30 = scmp.eq.s32.totalorder %s11, 0
      %p31 = por %p29, %p30
      %p32 = scmp.ne.s32.totalorder %s21, %s24
      %p33 = scmp.eq.s32.totalorder %s16, 1
      %p34 = por %p32, %p33
      %p35 = scmp.ne.s32.totalorder %s24, %s25
      %p36 = scmp.eq.s32.totalorder %s16, 0
      %p37 = por %p35, %p36
      %p38 = scmp.ne.s32.totalorder %s24, %s25
      %p39 = scmp.eq.s32.totalorder %s17, 1
      %p40 = por %p38, %p39
      %p42 = scmp.ne.s32.totalorder %s25, %s41
      %p43 = scmp.eq.s32.totalorder %s17, 0
      %p44 = por %p42, %p43
      %s46 = sadd.s32 %s45, 1
      %p49 = scmp.eq.s32.totalorder %s11, 1
      %p50 = scmp.ne.s32.totalorder %s45, %s47
      %p51 = scmp.eq.s32.totalorder %s11, 0
      %p52 = por %p50, %p51
      %p53 = scmp.ne.s32.totalorder %s45, %s47
      %p54 = scmp.eq.s32.totalorder %s16, 1
      %p55 = por %p53, %p54
      %p56 = scmp.ne.s32.totalorder %s47, %s48
      %p57 = scmp.eq.s32.totalorder %s16, 0
      %p58 = por %p56, %p57
      %p59 = scmp.ne.s32.totalorder %s47, %s48
      %p60 = scmp.eq.s32.totalorder %s17, 1
      %p61 = por %p59, %p60
      %p63 = scmp.ne.s32.totalorder %s48, %s62
      %p64 = scmp.eq.s32.totalorder %s17, 0
      %p65 = por %p63, %p64
      %s66 = ssub.s32 %s11, %s18
      %p67 = scmp.eq.s32.totalorder %s66, 0
      %s69 = sadd.s32 %s68, 1
      %s70 = scalar_select %p67, %s68, %s69
      %p73 = pneg %p67
      %p74 = scmp.eq.s32.totalorder %s11, 1
      %p75 = por %p73, %p74
      %p76 = scmp.ne.s32.totalorder %s68, %s71
      %p77 = scmp.eq.s32.totalorder %s11, 0
      %p78 = por %p76, %p77
      %p79 = scmp.ne.s32.totalorder %s68, %s71
      %p80 = scmp.eq.s32.totalorder %s16, 1
      %p81 = por %p79, %p80
      %p82 = scmp.ne.s32.totalorder %s71, %s72
      %p83 = scmp.eq.s32.totalorder %s16, 0
      %p84 = por %p82, %p83
      %p85 = scmp.ne.s32.totalorder %s71, %s72
      %p86 = scmp.eq.s32.totalorder %s17, 1
      %p87 = por %p85, %p86
      %p89 = scmp.ne.s32.totalorder %s72, %s88
      %p90 = scmp.eq.s32.totalorder %s17, 0
      %p91 = por %p89, %p90
      %p92 = scmp.le.s32.totalorder 1, %s11
      %p93 = scmp.lt.s32.totalorder %s11, 3
      %p94 = pnand %p92, %p93
      %p95 = pneg %p94
      // Predicated region
      $region9: #{tpu_custom_call.1} parent=5 // pred_check
        _
      $region10: #{tpu_custom_call.1} parent=5 // pred_check_branch
        %97 = sbr.rel (%p94) target = $region12
      $region11: #{tpu_custom_call.1} parent=5 // pred_region
        %s98 = ssub.s32 %s11, 1
        // Predicated region
        $region13: #{tpu_custom_call.1} parent=11 // pred_check
          %p99 = pneg %p58
        $region14: #{tpu_custom_call.1} parent=11 // pred_check_branch
          %101 = sbr.rel (%p99) target = $region16
        $region15: #{tpu_custom_call.1} parent=11 // pred_region
          _
        $region16: #{tpu_custom_call.1} parent=11 // pred_fallthru
          _
      $region12: #{tpu_custom_call.1} parent=5 // pred_fallthru
        _
      %p102 = scmp.lt.s32.totalorder %s11, 2
      // Predicated region
      $region17: #{tpu_custom_call.1} parent=5 // pred_check
        %p103 = pneg %p102
      $region18: #{tpu_custom_call.1} parent=5 // pred_check_branch
        %105 = sbr.rel (%p103) target = $region20
      $region19: #{tpu_custom_call.1} parent=5 // pred_region
        // Predicated region
        $region21: #{tpu_custom_call.1} parent=19 // pred_check
          %p106 = pneg %p31
        $region22: #{tpu_custom_call.1} parent=19 // pred_check_branch
          %108 = sbr.rel (%p106) target = $region24
        $region23: #{tpu_custom_call.1} parent=19 // pred_region
          %s109 = smul.u32 7, %s11
          %p110 = scmp.lt.s32.totalorder %s109, 13
          %s111 = scalar_select %p110, %s109, 13
          %s112 = smul.addr %s111, 8
          %s113 = scalar_lea.vmem %s0, %s112
          %s114 = smul.u32 7, %s11
        $region24: #{tpu_custom_call.1} parent=19 // pred_fallthru
          _
      $region20: #{tpu_custom_call.1} parent=5 // pred_fallthru
        _
      %p115 = scmp.le.s32.totalorder 1, %s11
      %p116 = scmp.lt.s32.totalorder %s11, 3
      %p117 = pnand %p115, %p116
      %p118 = pneg %p117
      // Predicated region
      $region25: #{tpu_custom_call.1} parent=5 // pred_check
        _
      $region26: #{tpu_custom_call.1} parent=5 // pred_check_branch
        %120 = sbr.rel (%p117) target = $region28
      $region27: #{tpu_custom_call.1} parent=5 // pred_region
        %s121 = ssub.s32 %s11, 1
        %s122 = smul.u32 7, %s16
        %p123 = scmp.lt.s32.totalorder %s122, 13
        %s124 = scalar_select %p123, %s122, 13
        %s125 = smul.addr %s124, 8
        %s126 = scalar_lea.vmem %s0, %s125
        %p127 = pneg %p37
        %p128 = pneg %p34
        %p129 = pneg %p58
        %p130 = pneg %p55
        %p131 = pneg %p84
        %p132 = pneg %p81
        %s133 = sand.u32 %s71, 1
        %s134 = scalar_lea.sflag [#allocation3], %s133
        %s135 = sand.u32 %s71, 1
        %s136 = smul.addr %s135, 168
        %s137 = scalar_lea.vmem [#allocation2], %s136
        %s138 = smul.u32 7, %s16
        %p139 = scmp.lt.s32.totalorder %s138, 13
        %s140 = scalar_select %p139, %s138, 13
        %s141 = smul.addr %s140, 8
        %s142 = scalar_lea.vmem %s0, %s141
        %s143 = smul.u32 7, %s16
        %s144 = smul.u32 7, %s16
        %s145 = ssub.s32 13, %s144
        %p146 = scmp.lt.s32.totalorder %s145, 7
        %s147 = scalar_select %p146, %s145, 7
        %s148 = smul.u32 8, %s147
        %s149 = smul.u32 %s148, 3
        %v150 = vld [vmem:[%s142] sm:$0xff]
        %v151 = vld [vmem:[%s142 + $0x8] sm:$0xff]
        %v152 = vld [vmem:[%s142 + $0x10] sm:$0xff]
        %v153 = vld [vmem:[%s142 + $0x18] sm:$0xff]
        %v154 = vld [vmem:[%s142 + $0x20] sm:$0xff]
        %v155 = vld [vmem:[%s142 + $0x28] sm:$0xff]
        %v156 = vld [vmem:[%s142 + $0x30] sm:$0xff]
        %v157 = vmul.f32 %v150, %v150
        %v158 = vmul.f32 %v151, %v151
        %v159 = vmul.f32 %v152, %v152
        %v160 = vmul.f32 %v153, %v153
        %v161 = vmul.f32 %v154, %v154
        %v162 = vmul.f32 %v155, %v155
        %v163 = vmul.f32 %v156, %v156
        %171 = vrot.lane.b32.xlu0 %v157, 127
        %v172 = vpop.permute.xlu0 %171
        %173 = vrot.lane.b32.xlu0 %v158, 127
        %v174 = vpop.permute.xlu0 %173
        %175 = vrot.lane.b32.xlu0 %v159, 127
        %v176 = vpop.permute.xlu0 %175
        %177 = vrot.lane.b32.xlu0 %v160, 127
        %v178 = vpop.permute.xlu0 %177
        %179 = vrot.lane.b32.xlu0 %v161, 127
        %v180 = vpop.permute.xlu0 %179
        %181 = vrot.lane.b32.xlu0 %v162, 127
        %v182 = vpop.permute.xlu0 %181
        %183 = vrot.lane.b32.xlu0 %v163, 127
        %v184 = vpop.permute.xlu0 %183
        %v192 = vadd.f32 %v157, %v172
        %v193 = vadd.f32 %v158, %v174
        %v194 = vadd.f32 %v159, %v176
        %v195 = vadd.f32 %v160, %v178
        %v196 = vadd.f32 %v161, %v180
        %v197 = vadd.f32 %v162, %v182
        %v198 = vadd.f32 %v163, %v184
        %199 = vrot.lane.b32.xlu0 %v157, 126
        %v200 = vpop.permute.xlu0 %199
        %201 = vrot.lane.b32.xlu0 %v158, 126
        %v202 = vpop.permute.xlu0 %201
        %203 = vrot.lane.b32.xlu0 %v159, 126
        %v204 = vpop.permute.xlu0 %203
        %205 = vrot.lane.b32.xlu0 %v160, 126
        %v206 = vpop.permute.xlu0 %205
        %207 = vrot.lane.b32.xlu0 %v161, 126
        %v208 = vpop.permute.xlu0 %207
        %209 = vrot.lane.b32.xlu0 %v162, 126
        %v210 = vpop.permute.xlu0 %209
        %211 = vrot.lane.b32.xlu0 %v163, 126
        %v212 = vpop.permute.xlu0 %211
        %v220 = vadd.f32 %v192, %v200
        %v221 = vadd.f32 %v193, %v202
        %v222 = vadd.f32 %v194, %v204
        %v223 = vadd.f32 %v195, %v206
        %v224 = vadd.f32 %v196, %v208
        %v225 = vadd.f32 %v197, %v210
        %v226 = vadd.f32 %v198, %v212
        %v227 = vrsqrt.pop %v220
        %v228 = vmul.f32 %v227, %v220
        %v229 = vmul.f32 %v228, %v227
        %v230 = vmul.f32 0.5, %v229
        %v231 = vsub.f32 1.5, %v230
        %v232 = vmul.f32 %v227, %v231
        %v233 = vmul.f32 %v220, %v232
        %vm234 = vcmp.eq.f32.partialorder %v220, inf
        %v235 = vsel %vm234, %v220, %v233
        %vm236 = vcmp.eq.f32.partialorder %v220, 0.0
        %v237 = vand.u32 %v220, 2147483648
        %v238 = vsel %vm236, %v237, %v235
        %v239 = vrsqrt.pop %v221
        %v240 = vmul.f32 %v239, %v221
        %v241 = vmul.f32 %v240, %v239
        %v242 = vmul.f32 0.5, %v241
        %v243 = vsub.f32 1.5, %v242
        %v244 = vmul.f32 %v239, %v243
        %v245 = vmul.f32 %v221, %v244
        %vm246 = vcmp.eq.f32.partialorder %v221, inf
        %v247 = vsel %vm246, %v221, %v245
        %vm248 = vcmp.eq.f32.partialorder %v221, 0.0
        %v249 = vand.u32 %v221, 2147483648
        %v250 = vsel %vm248, %v249, %v247
        %v251 = vrsqrt.pop %v222
        %v252 = vmul.f32 %v251, %v222
        %v253 = vmul.f32 %v252, %v251
        %v254 = vmul.f32 0.5, %v253
        %v255 = vsub.f32 1.5, %v254
        %v256 = vmul.f32 %v251, %v255
        %v257 = vmul.f32 %v222, %v256
        %vm258 = vcmp.eq.f32.partialorder %v222, inf
        %v259 = vsel %vm258, %v222, %v257
        %vm260 = vcmp.eq.f32.partialorder %v222, 0.0
        %v261 = vand.u32 %v222, 2147483648
        %v262 = vsel %vm260, %v261, %v259
        %v263 = vrsqrt.pop %v223
        %v264 = vmul.f32 %v263, %v223
        %v265 = vmul.f32 %v264, %v263
        %v266 = vmul.f32 0.5, %v265
        %v267 = vsub.f32 1.5, %v266
        %v268 = vmul.f32 %v263, %v267
        %v269 = vmul.f32 %v223, %v268
        %vm270 = vcmp.eq.f32.partialorder %v223, inf
        %v271 = vsel %vm270, %v223, %v269
        %vm272 = vcmp.eq.f32.partialorder %v223, 0.0
        %v273 = vand.u32 %v223, 2147483648
        %v274 = vsel %vm272, %v273, %v271
        %v275 = vrsqrt.pop %v224
        %v276 = vmul.f32 %v275, %v224
        %v277 = vmul.f32 %v276, %v275
        %v278 = vmul.f32 0.5, %v277
        %v279 = vsub.f32 1.5, %v278
        %v280 = vmul.f32 %v275, %v279
        %v281 = vmul.f32 %v224, %v280
        %vm282 = vcmp.eq.f32.partialorder %v224, inf
        %v283 = vsel %vm282, %v224, %v281
        %vm284 = vcmp.eq.f32.partialorder %v224, 0.0
        %v285 = vand.u32 %v224, 2147483648
        %v286 = vsel %vm284, %v285, %v283
        %v287 = vrsqrt.pop %v225
        %v288 = vmul.f32 %v287, %v225
        %v289 = vmul.f32 %v288, %v287
        %v290 = vmul.f32 0.5, %v289
        %v291 = vsub.f32 1.5, %v290
        %v292 = vmul.f32 %v287, %v291
        %v293 = vmul.f32 %v225, %v292
        %vm294 = vcmp.eq.f32.partialorder %v225, inf
        %v295 = vsel %vm294, %v225, %v293
        %vm296 = vcmp.eq.f32.partialorder %v225, 0.0
        %v297 = vand.u32 %v225, 2147483648
        %v298 = vsel %vm296, %v297, %v295
        %v299 = vrsqrt.pop %v226
        %v300 = vmul.f32 %v299, %v226
        %v301 = vmul.f32 %v300, %v299
        %v302 = vmul.f32 0.5, %v301
        %v303 = vsub.f32 1.5, %v302
        %v304 = vmul.f32 %v299, %v303
        %v305 = vmul.f32 %v226, %v304
        %vm306 = vcmp.eq.f32.partialorder %v226, inf
        %v307 = vsel %vm306, %v226, %v305
        %vm308 = vcmp.eq.f32.partialorder %v226, 0.0
        %v309 = vand.u32 %v226, 2147483648
        %v310 = vsel %vm308, %v309, %v307
        %v311 = vadd.f32 %v238, 1e-07
        %v312 = vadd.f32 %v250, 1e-07
        %v313 = vadd.f32 %v262, 1e-07
        %v314 = vadd.f32 %v274, 1e-07
        %v315 = vadd.f32 %v286, 1e-07
        %v316 = vadd.f32 %v298, 1e-07
        %v317 = vadd.f32 %v310, 1e-07
        %v318 = vrcp.pop %v311
        %v319 = vmul.f32 %v311, %v318
        %v320 = vsub.f32 1.0, %v319
        %v321 = vmul.f32 %v318, %v320
        %v322 = vadd.f32 %v318, %v321
        %vm323 = vweird.f32 %v311
        %vm324 = vweird.f32 %v318
        %vm325 = vmor %vm323, %vm324
        %v326 = vsel %vm325, %v318, %v322
        %v327 = vand.u32 2147483647, %v311
        %vm328 = vcmp.eq.f32.partialorder %v327, 8.507059e+37
        %v329 = vand.u32 %v311, 2147483648
        %v330 = vor.u32 1.1754944e-38, %v329
        %v331 = vsel %vm328, %v330, %v326
        %v332 = vrcp.pop %v312
        %v333 = vmul.f32 %v312, %v332
        %v334 = vsub.f32 1.0, %v333
        %v335 = vmul.f32 %v332, %v334
        %v336 = vadd.f32 %v332, %v335
        %vm337 = vweird.f32 %v312
        %vm338 = vweird.f32 %v332
        %vm339 = vmor %vm337, %vm338
        %v340 = vsel %vm339, %v332, %v336
        %v341 = vand.u32 2147483647, %v312
        %vm342 = vcmp.eq.f32.partialorder %v341, 8.507059e+37
        %v343 = vand.u32 %v312, 2147483648
        %v344 = vor.u32 1.1754944e-38, %v343
        %v345 = vsel %vm342, %v344, %v340
        %v346 = vrcp.pop %v313
        %v347 = vmul.f32 %v313, %v346
        %v348 = vsub.f32 1.0, %v347
        %v349 = vmul.f32 %v346, %v348
        %v350 = vadd.f32 %v346, %v349
        %vm351 = vweird.f32 %v313
        %vm352 = vweird.f32 %v346
        %vm353 = vmor %vm351, %vm352
        %v354 = vsel %vm353, %v346, %v350
        %v355 = vand.u32 2147483647, %v313
        %vm356 = vcmp.eq.f32.partialorder %v355, 8.507059e+37
        %v357 = vand.u32 %v313, 2147483648
        %v358 = vor.u32 1.1754944e-38, %v357
        %v359 = vsel %vm356, %v358, %v354
        %v360 = vrcp.pop %v314
        %v361 = vmul.f32 %v314, %v360
        %v362 = vsub.f32 1.0, %v361
        %v363 = vmul.f32 %v360, %v362
        %v364 = vadd.f32 %v360, %v363
        %vm365 = vweird.f32 %v314
        %vm366 = vweird.f32 %v360
        %vm367 = vmor %vm365, %vm366
        %v368 = vsel %vm367, %v360, %v364
        %v369 = vand.u32 2147483647, %v314
        %vm370 = vcmp.eq.f32.partialorder %v369, 8.507059e+37
        %v371 = vand.u32 %v314, 2147483648
        %v372 = vor.u32 1.1754944e-38, %v371
        %v373 = vsel %vm370, %v372, %v368
        %v374 = vrcp.pop %v315
        %v375 = vmul.f32 %v315, %v374
        %v376 = vsub.f32 1.0, %v375
        %v377 = vmul.f32 %v374, %v376
        %v378 = vadd.f32 %v374, %v377
        %vm379 = vweird.f32 %v315
        %vm380 = vweird.f32 %v374
        %vm381 = vmor %vm379, %vm380
        %v382 = vsel %vm381, %v374, %v378
        %v383 = vand.u32 2147483647, %v315
        %vm384 = vcmp.eq.f32.partialorder %v383, 8.507059e+37
        %v385 = vand.u32 %v315, 2147483648
        %v386 = vor.u32 1.1754944e-38, %v385
        %v387 = vsel %vm384, %v386, %v382
        %v388 = vrcp.pop %v316
        %v389 = vmul.f32 %v316, %v388
        %v390 = vsub.f32 1.0, %v389
        %v391 = vmul.f32 %v388, %v390
        %v392 = vadd.f32 %v388, %v391
        %vm393 = vweird.f32 %v316
        %vm394 = vweird.f32 %v388
        %vm395 = vmor %vm393, %vm394
        %v396 = vsel %vm395, %v388, %v392
        %v397 = vand.u32 2147483647, %v316
        %vm398 = vcmp.eq.f32.partialorder %v397, 8.507059e+37
        %v399 = vand.u32 %v316, 2147483648
        %v400 = vor.u32 1.1754944e-38, %v399
        %v401 = vsel %vm398, %v400, %v396
        %v402 = vrcp.pop %v317
        %v403 = vmul.f32 %v317, %v402
        %v404 = vsub.f32 1.0, %v403
        %v405 = vmul.f32 %v402, %v404
        %v406 = vadd.f32 %v402, %v405
        %vm407 = vweird.f32 %v317
        %vm408 = vweird.f32 %v402
        %vm409 = vmor %vm407, %vm408
        %v410 = vsel %vm409, %v402, %v406
        %v411 = vand.u32 2147483647, %v317
        %vm412 = vcmp.eq.f32.partialorder %v411, 8.507059e+37
        %v413 = vand.u32 %v317, 2147483648
        %v414 = vor.u32 1.1754944e-38, %v413
        %v415 = vsel %vm412, %v414, %v410
        %v416 = vmul.f32 %v150, %v331
        %v417 = vmul.f32 %v151, %v345
        %v418 = vmul.f32 %v152, %v359
        %v419 = vmul.f32 %v153, %v373
        %v420 = vmul.f32 %v154, %v387
        %v421 = vmul.f32 %v155, %v401
        %v422 = vmul.f32 %v156, %v415
        %v423 = vld [vmem:[%s1] ss:$4 sm:$0x7]
        %425 = vset.pattern.permute.xlu0 0
        %426 = vperm.xlu0 %425, %v416
        %v427 = vpop.permute.xlu0 %426
        %430 = vset.pattern.permute.xlu0 0
        %431 = vperm.xlu0 %430, %v417
        %v432 = vpop.permute.xlu0 %431
        %435 = vset.pattern.permute.xlu0 0
        %436 = vperm.xlu0 %435, %v418
        %v437 = vpop.permute.xlu0 %436
        %440 = vset.pattern.permute.xlu0 0
        %441 = vperm.xlu0 %440, %v419
        %v442 = vpop.permute.xlu0 %441
        %445 = vset.pattern.permute.xlu0 0
        %446 = vperm.xlu0 %445, %v420
        %v447 = vpop.permute.xlu0 %446
        %450 = vset.pattern.permute.xlu0 0
        %451 = vperm.xlu0 %450, %v421
        %v452 = vpop.permute.xlu0 %451
        %455 = vset.pattern.permute.xlu0 0
        %456 = vperm.xlu0 %455, %v422
        %v457 = vpop.permute.xlu0 %456
        %v460 = vperm.slane %v423, 0
        %v461 = vperm.slane %v423, 1
        %v462 = vperm.slane %v423, 2
        %v466 = vmul.f32 %v427, %v460
        %v467 = vmul.f32 %v427, %v461
        %v468 = vmul.f32 %v427, %v462
        %v469 = vmul.f32 %v432, %v460
        %v470 = vmul.f32 %v432, %v461
        %v471 = vmul.f32 %v432, %v462
        %v472 = vmul.f32 %v437, %v460
        %v473 = vmul.f32 %v437, %v461
        %v474 = vmul.f32 %v437, %v462
        %v475 = vmul.f32 %v442, %v460
        %v476 = vmul.f32 %v442, %v461
        %v477 = vmul.f32 %v442, %v462
        %v478 = vmul.f32 %v447, %v460
        %v479 = vmul.f32 %v447, %v461
        %v480 = vmul.f32 %v447, %v462
        %v481 = vmul.f32 %v452, %v460
        %v482 = vmul.f32 %v452, %v461
        %v483 = vmul.f32 %v452, %v462
        %v484 = vmul.f32 %v457, %v460
        %v485 = vmul.f32 %v457, %v461
        %v486 = vmul.f32 %v457, %v462
        %494 = vrot.lane.b32.xlu0 %v331, 1
        %v495 = vpop.permute.xlu0 %494
        %496 = vrot.lane.b32.xlu0 %v345, 1
        %v497 = vpop.permute.xlu0 %496
        %498 = vrot.lane.b32.xlu0 %v359, 1
        %v499 = vpop.permute.xlu0 %498
        %500 = vrot.lane.b32.xlu0 %v373, 1
        %v501 = vpop.permute.xlu0 %500
        %502 = vrot.lane.b32.xlu0 %v387, 1
        %v503 = vpop.permute.xlu0 %502
        %504 = vrot.lane.b32.xlu0 %v401, 1
        %v505 = vpop.permute.xlu0 %504
        %506 = vrot.lane.b32.xlu0 %v415, 1
        %v507 = vpop.permute.xlu0 %506
        %v515 = vmul.f32 %v150, %v495
        %v516 = vmul.f32 %v151, %v497
        %v517 = vmul.f32 %v152, %v499
        %v518 = vmul.f32 %v153, %v501
        %v519 = vmul.f32 %v154, %v503
        %v520 = vmul.f32 %v155, %v505
        %v521 = vmul.f32 %v156, %v507
        %s522 = scalar_lea.vmem %s1, 1
        %v523 = vld [vmem:[%s522] ss:$4 sm:$0x7]
        %525 = vset.pattern.permute.xlu0 1
        %526 = vperm.xlu0 %525, %v515
        %v527 = vpop.permute.xlu0 %526
        %530 = vset.pattern.permute.xlu0 1
        %531 = vperm.xlu0 %530, %v516
        %v532 = vpop.permute.xlu0 %531
        %535 = vset.pattern.permute.xlu0 1
        %536 = vperm.xlu0 %535, %v517
        %v537 = vpop.permute.xlu0 %536
        %540 = vset.pattern.permute.xlu0 1
        %541 = vperm.xlu0 %540, %v518
        %v542 = vpop.permute.xlu0 %541
        %545 = vset.pattern.permute.xlu0 1
        %546 = vperm.xlu0 %545, %v519
        %v547 = vpop.permute.xlu0 %546
        %550 = vset.pattern.permute.xlu0 1
        %551 = vperm.xlu0 %550, %v520
        %v552 = vpop.permute.xlu0 %551
        %555 = vset.pattern.permute.xlu0 1
        %556 = vperm.xlu0 %555, %v521
        %v557 = vpop.permute.xlu0 %556
        %v560 = vperm.slane %v523, 0
        %v561 = vperm.slane %v523, 1
        %v562 = vperm.slane %v523, 2
        %v566 = vmul.f32 %v527, %v560
        %v567 = vmul.f32 %v527, %v561
        %v568 = vmul.f32 %v527, %v562
        %v569 = vmul.f32 %v532, %v560
        %v570 = vmul.f32 %v532, %v561
        %v571 = vmul.f32 %v532, %v562
        %v572 = vmul.f32 %v537, %v560
        %v573 = vmul.f32 %v537, %v561
        %v574 = vmul.f32 %v537, %v562
        %v575 = vmul.f32 %v542, %v560
        %v576 = vmul.f32 %v542, %v561
        %v577 = vmul.f32 %v542, %v562
        %v578 = vmul.f32 %v547, %v560
        %v579 = vmul.f32 %v547, %v561
        %v580 = vmul.f32 %v547, %v562
        %v581 = vmul.f32 %v552, %v560
        %v582 = vmul.f32 %v552, %v561
        %v583 = vmul.f32 %v552, %v562
        %v584 = vmul.f32 %v557, %v560
        %v585 = vmul.f32 %v557, %v561
        %v586 = vmul.f32 %v557, %v562
        %v587 = vadd.f32 %v466, %v566
        %v588 = vadd.f32 %v467, %v567
        %v589 = vadd.f32 %v468, %v568
        %v590 = vadd.f32 %v469, %v569
        %v591 = vadd.f32 %v470, %v570
        %v592 = vadd.f32 %v471, %v571
        %v593 = vadd.f32 %v472, %v572
        %v594 = vadd.f32 %v473, %v573
        %v595 = vadd.f32 %v474, %v574
        %v596 = vadd.f32 %v475, %v575
        %v597 = vadd.f32 %v476, %v576
        %v598 = vadd.f32 %v477, %v577
        %v599 = vadd.f32 %v478, %v578
        %v600 = vadd.f32 %v479, %v579
        %v601 = vadd.f32 %v480, %v580
        %v602 = vadd.f32 %v481, %v581
        %v603 = vadd.f32 %v482, %v582
        %v604 = vadd.f32 %v483, %v583
        %v605 = vadd.f32 %v484, %v584
        %v606 = vadd.f32 %v485, %v585
        %v607 = vadd.f32 %v486, %v586
        %608 = vrot.lane.b32.xlu0 %v331, 2
        %v609 = vpop.permute.xlu0 %608
        %610 = vrot.lane.b32.xlu0 %v345, 2
        %v611 = vpop.permute.xlu0 %610
        %612 = vrot.lane.b32.xlu0 %v359, 2
        %v613 = vpop.permute.xlu0 %612
        %614 = vrot.lane.b32.xlu0 %v373, 2
        %v615 = vpop.permute.xlu0 %614
        %616 = vrot.lane.b32.xlu0 %v387, 2
        %v617 = vpop.permute.xlu0 %616
        %618 = vrot.lane.b32.xlu0 %v401, 2
        %v619 = vpop.permute.xlu0 %618
        %620 = vrot.lane.b32.xlu0 %v415, 2
        %v621 = vpop.permute.xlu0 %620
        %v629 = vmul.f32 %v150, %v609
        %v630 = vmul.f32 %v151, %v611
        %v631 = vmul.f32 %v152, %v613
        %v632 = vmul.f32 %v153, %v615
        %v633 = vmul.f32 %v154, %v617
        %v634 = vmul.f32 %v155, %v619
        %v635 = vmul.f32 %v156, %v621
        %s636 = scalar_lea.vmem %s1, 2
        %v637 = vld [vmem:[%s636] ss:$4 sm:$0x7]
        %639 = vset.pattern.permute.xlu0 2
        %640 = vperm.xlu0 %639, %v629
        %v641 = vpop.permute.xlu0 %640
        %644 = vset.pattern.permute.xlu0 2
        %645 = vperm.xlu0 %644, %v630
        %v646 = vpop.permute.xlu0 %645
        %649 = vset.pattern.permute.xlu0 2
        %650 = vperm.xlu0 %649, %v631
        %v651 = vpop.permute.xlu0 %650
        %654 = vset.pattern.permute.xlu0 2
        %655 = vperm.xlu0 %654, %v632
        %v656 = vpop.permute.xlu0 %655
        %659 = vset.pattern.permute.xlu0 2
        %660 = vperm.xlu0 %659, %v633
        %v661 = vpop.permute.xlu0 %660
        %664 = vset.pattern.permute.xlu0 2
        %665 = vperm.xlu0 %664, %v634
        %v666 = vpop.permute.xlu0 %665
        %669 = vset.pattern.permute.xlu0 2
        %670 = vperm.xlu0 %669, %v635
        %v671 = vpop.permute.xlu0 %670
        %v674 = vperm.slane %v637, 0
        %v675 = vperm.slane %v637, 1
        %v676 = vperm.slane %v637, 2
        %v680 = vmul.f32 %v641, %v674
        %v681 = vmul.f32 %v641, %v675
        %v682 = vmul.f32 %v641, %v676
        %v683 = vmul.f32 %v646, %v674
        %v684 = vmul.f32 %v646, %v675
        %v685 = vmul.f32 %v646, %v676
        %v686 = vmul.f32 %v651, %v674
        %v687 = vmul.f32 %v651, %v675
        %v688 = vmul.f32 %v651, %v676
        %v689 = vmul.f32 %v656, %v674
        %v690 = vmul.f32 %v656, %v675
        %v691 = vmul.f32 %v656, %v676
        %v692 = vmul.f32 %v661, %v674
        %v693 = vmul.f32 %v661, %v675
        %v694 = vmul.f32 %v661, %v676
        %v695 = vmul.f32 %v666, %v674
        %v696 = vmul.f32 %v666, %v675
        %v697 = vmul.f32 %v666, %v676
        %v698 = vmul.f32 %v671, %v674
        %v699 = vmul.f32 %v671, %v675
        %v700 = vmul.f32 %v671, %v676
        %v701 = vadd.f32 %v587, %v680
        %v702 = vadd.f32 %v588, %v681
        %v703 = vadd.f32 %v589, %v682
        %v704 = vadd.f32 %v590, %v683
        %v705 = vadd.f32 %v591, %v684
        %v706 = vadd.f32 %v592, %v685
        %v707 = vadd.f32 %v593, %v686
        %v708 = vadd.f32 %v594, %v687
        %v709 = vadd.f32 %v595, %v688
        %v710 = vadd.f32 %v596, %v689
        %v711 = vadd.f32 %v597, %v690
        %v712 = vadd.f32 %v598, %v691
        %v713 = vadd.f32 %v599, %v692
        %v714 = vadd.f32 %v600, %v693
        %v715 = vadd.f32 %v601, %v694
        %v716 = vadd.f32 %v602, %v695
        %v717 = vadd.f32 %v603, %v696
        %v718 = vadd.f32 %v604, %v697
        %v719 = vadd.f32 %v605, %v698
        %v720 = vadd.f32 %v606, %v699
        %v721 = vadd.f32 %v607, %v700
        %722 = vst [vmem:[%s137] sm:$0xff] %v701
        %723 = vst [vmem:[%s137 + $0x8] sm:$0xff] %v702
        %724 = vst [vmem:[%s137 + $0x10] sm:$0xff] %v703
        %725 = vst [vmem:[%s137 + $0x18] sm:$0xff] %v704
        %726 = vst [vmem:[%s137 + $0x20] sm:$0xff] %v705
        %727 = vst [vmem:[%s137 + $0x28] sm:$0xff] %v706
        %728 = vst [vmem:[%s137 + $0x30] sm:$0xff] %v707
        %729 = vst [vmem:[%s137 + $0x38] sm:$0xff] %v708
        %730 = vst [vmem:[%s137 + $0x40] sm:$0xff] %v709
        %731 = vst [vmem:[%s137 + $0x48] sm:$0xff] %v710
        %732 = vst [vmem:[%s137 + $0x50] sm:$0xff] %v711
        %733 = vst [vmem:[%s137 + $0x58] sm:$0xff] %v712
        %734 = vst [vmem:[%s137 + $0x60] sm:$0xff] %v713
        %735 = vst [vmem:[%s137 + $0x68] sm:$0xff] %v714
        %736 = vst [vmem:[%s137 + $0x70] sm:$0xff] %v715
        %737 = vst [vmem:[%s137 + $0x78] sm:$0xff] %v716
        %738 = vst [vmem:[%s137 + $0x80] sm:$0xff] %v717
        %739 = vst [vmem:[%s137 + $0x88] sm:$0xff] %v718
        %740 = vst [vmem:[%s137 + $0x90] sm:$0xff] %v719
        %741 = vst [vmem:[%s137 + $0x98] sm:$0xff] %v720
        %742 = vst [vmem:[%s137 + $0xa0] sm:$0xff] %v721
        %s743 = sand.u32 %s71, 1
        %s744 = scalar_lea.sflag [#allocation3], %s743
        %s745 = sand.u32 %s71, 1
        %s746 = smul.addr %s745, 168
        %s747 = scalar_lea.vmem [#allocation2], %s746
        // Predicated region
        $region29: #{tpu_custom_call.1} parent=27 // pred_check
          %p748 = pneg %p81
        $region30: #{tpu_custom_call.1} parent=27 // pred_check_branch
          %750 = sbr.rel (%p748) target = $region32
        $region31: #{tpu_custom_call.1} parent=27 // pred_region
          %s751 = smul.u32 7, %s16
          %s752 = ssub.s32 13, %s751
          %p753 = scmp.lt.s32.totalorder %s752, 7
          %s754 = scalar_select %p753, %s752, 7
          %s755 = smul.u32 8, %s754
          %s756 = smul.u32 %s755, 3
          %s757 = ssub.s32 168, %s756
          %s758 = sshll.u32 %s757, 4
          %759 = vsyncadd %s744, %s758
          %p760 = scmp.ne.s32.totalorder 0, %s756
          %s761 = smul.addr %s751, 3
          %s762 = smul.addr %s761, 8
          %s763 = scalar_lea.hbm %s2, %s762
          %s764 = smul.u32 24, %s754
          %s765 = sshll.u32 %s747, 4
          %s766 = int_to_ptr.vmem [resolvable:$true] %s765
          %s767 = sshll.u32 %s763, 4
          %s768 = int_to_ptr.hbm [resolvable:$true] %s767
          %s769 = sshll.u32 %s764, 4
          %773 = dma.vmem_to_hbm [thread:$0]  (%p760), %s766, %s769, %s768, %s744, 384, 384, 24
        $region32: #{tpu_custom_call.1} parent=27 // pred_fallthru
          _
      $region28: #{tpu_custom_call.1} parent=5 // pred_fallthru
        _
      %p774 = scmp.le.s32.totalorder 2, %s11
      // Predicated region
      $region33: #{tpu_custom_call.1} parent=5 // pred_check
        %p775 = pneg %p774
      $region34: #{tpu_custom_call.1} parent=5 // pred_check_branch
        %777 = sbr.rel (%p775) target = $region36
      $region35: #{tpu_custom_call.1} parent=5 // pred_region
        %s778 = ssub.s32 %s11, 2
        // Predicated region
        $region37: #{tpu_custom_call.1} parent=35 // pred_check
          %p779 = pneg %p87
        $region38: #{tpu_custom_call.1} parent=35 // pred_check_branch
          %781 = sbr.rel (%p779) target = $region40
        $region39: #{tpu_custom_call.1} parent=35 // pred_region
          %s782 = sand.u32 %s72, 1
          %s783 = scalar_lea.sflag [#allocation3], %s782
          %s784 = sand.u32 %s72, 1
          %s785 = smul.addr %s784, 168
          %s786 = scalar_lea.vmem [#allocation2], %s785
          %788 = dma.done %s783, 2688
        $region40: #{tpu_custom_call.1} parent=35 // pred_fallthru
          _
      $region36: #{tpu_custom_call.1} parent=5 // pred_fallthru
        _
    $region6: #{tpu_custom_call.1} parent=1 // loop_footer
      %s15 = sadd.s32 1, %s11
    $region7: #{tpu_custom_call.1} parent=1 // loop_footer_branch
      %10 = sbr.rel target = $region3
    $region8: #{tpu_custom_call.1} parent=1 // loop_exit
      _
    %789 = vsyncpa [#allocation3], 1
    %s790 = scalar_lea.sflag [#allocation3], 1
    %791 = vsyncpa %s790, 1

</llo_original>
